<compile_context>
chip_gen: v5e
topology: v5e:2x2
jax: 0.10.0
libtpu: 0.0.40
codegen_flags: <defaults>
</compile_context>

<pallas_src>
import functools

import jax
import jax.numpy as jnp
import numpy as np
from jax.experimental import pallas as pl
from jax.experimental.pallas import tpu as pltpu


def _coord_norm_kernel(c_ref, m_ref, inv_n_ref, w_ref, o_ref, *, eps, zero_com, d_equi):
    # c_ref:     (Bt, N, 3*D)  lane-flattened xyz*d_equi
    # m_ref:     (Bt, N, 1)    node mask (f32)
    # inv_n_ref: (Bt, 1, 1)    1 / n_atoms (precomputed in wrapper, f32)
    # w_ref:     (1, 1, 3*D)   set_weights replicated across the xyz axis (f32)
    D = d_equi
    c = c_ref[...].astype(jnp.float32)           # (Bt, N, 3D)
    m = m_ref[...]                               # (Bt, N, 1)
    inv_n = inv_n_ref[...]                       # (Bt, 1, 1)
    w3 = w_ref[...]                              # (1, 1, 3D)

    if zero_com:
        # Masked mean over real nodes, subtracted from ALL rows (smolF.zero_com);
        # padded rows are re-zeroed by the final mask multiply.
        com = jnp.sum(c * m, axis=1, keepdims=True) * inv_n     # (Bt, 1, 3D)
        c = c - com

    # ||.||_2 over the xyz axis: lane layout is [x_0..x_{D-1}, y_*, z_*].
    cx = c[:, :, 0:D]
    cy = c[:, :, D:2 * D]
    cz = c[:, :, 2 * D:3 * D]
    lengths = jnp.sqrt(cx * cx + cy * cy + cz * cz)             # (Bt, N, D)

    # Mean length over nodes (padded rows included, matching the PyTorch code).
    scaled = jnp.sum(lengths, axis=1, keepdims=True) * inv_n    # (Bt, 1, D)
    inv_scaled = pl.reciprocal(scaled + eps)                    # (Bt, 1, D), exact
    inv_scaled3 = jnp.concatenate([inv_scaled, inv_scaled, inv_scaled], axis=-1)
    scale = w3 * inv_scaled3                                    # (Bt, 1, 3D)

    # Two full-tile VPU multiplies + one full-tile store.
    o_ref[...] = (c * scale * m).astype(o_ref.dtype)


def _round_up(x, m):
    return (x + m - 1) // m * m


def _pick_block_b(batch, n, d3, io_itemsize, vmem_budget_bytes=16 << 20):
    """Largest Bt dividing B whose double-buffered VMEM footprint fits the budget,
    preferring a grid of >= 2 steps (megacore sharding) when B > 1."""
    n_pad = _round_up(max(n, 1), 8)
    lanes = _round_up(d3, 128)
    per_b = n_pad * lanes * io_itemsize * 2      # coord in-tile + out-tile
    per_b += n_pad * 128 * 4                     # mask tile (f32, lane-padded to 128)
    per_b *= 2                                   # double buffering
    best = 1
    for bt in range(1, batch + 1):
        if batch % bt != 0:
            continue
        if bt * per_b > vmem_budget_bytes:
            break
        if (batch // bt) >= 2 or batch == 1:
            best = bt
    return best


def coord_norm_pallas(coord_sets, node_mask, set_weights, *, eps=1e-6, zero_com=True,
                      block_b=None):
    """coord_sets: [B, N, 3, d_equi], node_mask: [B, N], set_weights: [1,1,1,d_equi]."""
    B, N, three, D = coord_sets.shape
    assert three == 3
    D3 = 3 * D

    # Free, contiguous reshapes only -- no HBM transposes.
    c = coord_sets.reshape(B, N, D3)
    m = node_mask.astype(jnp.float32).reshape(B, N, 1)

    # Precompute 1 / n_atoms once outside the kernel (cheap XLA reduce).
    n_atoms = jnp.sum(node_mask.astype(jnp.float32), axis=-1)    # (B,)
    inv_n = (1.0 / n_atoms).reshape(B, 1, 1).astype(jnp.float32)

    # set_weights replicated across the xyz axis so it lines up with the lane layout.
    # Kept in f32 (kernel compute dtype) to avoid a double cast.
    w3 = jnp.tile(set_weights.reshape(1, D).astype(jnp.float32), (1, 3)).reshape(1, 1, D3)

    if block_b is None:
        block_b = _pick_block_b(B, N, D3, coord_sets.dtype.itemsize)
    assert B % block_b == 0
    grid = (B // block_b,)

    kernel = functools.partial(_coord_norm_kernel, eps=eps, zero_com=zero_com, d_equi=D)
    out = pl.pallas_call(
        kernel,
        out_shape=jax.ShapeDtypeStruct((B, N, D3), coord_sets.dtype),
        grid_spec=pltpu.PrefetchScalarGridSpec(
            num_scalar_prefetch=0,
            grid=grid,
            in_specs=[
                pl.BlockSpec((block_b, N, D3), lambda b: (b, 0, 0)),
                pl.BlockSpec((block_b, N, 1), lambda b: (b, 0, 0)),
                pl.BlockSpec((block_b, 1, 1), lambda b: (b, 0, 0)),
                pl.BlockSpec((1, 1, D3), lambda b: (0, 0, 0)),
            ],
            out_specs=pl.BlockSpec((block_b, N, D3), lambda b: (b, 0, 0)),
        ),
        compiler_params=pltpu.CompilerParams(
            dimension_semantics=("parallel",),
            vmem_limit_bytes=32 * 1024 * 1024,
        ),
    )(c, m, inv_n, w3)
    return out.reshape(B, N, 3, D)


def coord_norm_ref(coord_sets, node_mask, set_weights, *, eps=1e-6, zero_com=True):
    """Plain-JAX reference of the PyTorch forward, for verification."""
    m = node_mask[..., None, None]                           # [B, N, 1, 1]
    n_atoms = node_mask.sum(axis=-1).reshape(-1, 1, 1, 1)    # [B, 1, 1, 1]
    c = coord_sets
    if zero_com:
        com = (c * m).sum(axis=1, keepdims=True) / n_atoms
        c = c - com
    lengths = jnp.sqrt((c * c).sum(axis=2, keepdims=True))   # [B, N, 1, D]
    scaled = lengths.sum(axis=1, keepdims=True) / n_atoms    # [B, 1, 1, D]
    out = c * set_weights / (scaled + eps)
    return out * m


if __name__ == "__main__":
    B, N, D_EQUI = 4, 16, 8

    key = jax.random.PRNGKey(0)
    k_coords, k_w = jax.random.split(key)
    coord_sets = jax.random.normal(k_coords, (B, N, 3, D_EQUI), dtype=jnp.float32)

    # node_mask: varying number of real nodes per batch element.
    real_counts = jnp.array([16, 12, 9, 14], dtype=jnp.int32)
    node_mask = (jnp.arange(N)[None, :] < real_counts[:, None]).astype(jnp.float32)
    # zero out padded coords (typical usage)
    coord_sets = coord_sets * node_mask[..., None, None]

    # Parameter per __init__ is ones((1,1,1,d_equi)); use non-trivial values to
    # exercise the weight path.
    set_weights = 0.5 + jax.random.uniform(k_w, (1, 1, 1, D_EQUI), dtype=jnp.float32)

    out = coord_norm_pallas(coord_sets, node_mask, set_weights,
                            eps=1e-6, zero_com=True)
    out = jax.block_until_ready(out)

    ref = coord_norm_ref(coord_sets, node_mask, set_weights,
                         eps=1e-6, zero_com=True)
    np.testing.assert_allclose(np.asarray(out), np.asarray(ref),
                               rtol=1e-5, atol=1e-5)
    print("KERNEL_OK")
</pallas_src>

<mosaic_0001>
module attributes {stable_mosaic.version = 11 : i64} {
  func.func @_coord_norm_kernel(%arg0: i32, %arg1: memref<2x16x24xf32, #tpu.memory_space<vmem>>, %arg2: memref<2x16x1xf32, #tpu.memory_space<vmem>>, %arg3: memref<2x1x1xf32, #tpu.memory_space<vmem>>, %arg4: memref<1x1x24xf32, #tpu.memory_space<vmem>>, %arg5: memref<2x16x24xf32, #tpu.memory_space<vmem>>) attributes {dimension_semantics = [#tpu.dimension_semantics<parallel>], iteration_bounds = array<i64: 2>, scalar_prefetch = 0 : i64, scratch_operands = 0 : i64, tpu.core_type = #tpu.core_type<tc>, window_params = [{transform_indices = @transform_0, window_bounds = array<i64: 2, 16, 24>}, {transform_indices = @transform_1, window_bounds = array<i64: 2, 16, 1>}, {transform_indices = @transform_2, window_bounds = array<i64: 2, 1, 1>}, {pipeline_mode = #tpu.pipeline_mode<synchronous>, transform_indices = @transform_3, window_bounds = array<i64: 1, 1, 24>}, {transform_indices = @transform_4, window_bounds = array<i64: 2, 16, 24>}]} {
    %c0 = arith.constant 0 : index
    %c0_0 = arith.constant 0 : index
    %c0_1 = arith.constant 0 : index
    %0 = vector.load %arg1[%c0, %c0_0, %c0_1] : memref<2x16x24xf32, #tpu.memory_space<vmem>>, vector<2x16x24xf32>
    %c0_2 = arith.constant 0 : index
    %c0_3 = arith.constant 0 : index
    %c0_4 = arith.constant 0 : index
    %1 = vector.load %arg2[%c0_2, %c0_3, %c0_4] : memref<2x16x1xf32, #tpu.memory_space<vmem>>, vector<2x16x1xf32>
    %c0_5 = arith.constant 0 : index
    %c0_6 = arith.constant 0 : index
    %c0_7 = arith.constant 0 : index
    %2 = vector.load %arg3[%c0_5, %c0_6, %c0_7] : memref<2x1x1xf32, #tpu.memory_space<vmem>>, vector<2x1x1xf32>
    %c0_8 = arith.constant 0 : index
    %c0_9 = arith.constant 0 : index
    %c0_10 = arith.constant 0 : index
    %3 = vector.load %arg4[%c0_8, %c0_9, %c0_10] : memref<1x1x24xf32, #tpu.memory_space<vmem>>, vector<1x1x24xf32>
    %4 = vector.broadcast %1 : vector<2x16x1xf32> to vector<2x16x24xf32>
    %5 = arith.mulf %0, %4 : vector<2x16x24xf32>
    %cst = arith.constant dense<0.000000e+00> : vector<2x24xf32>
    %6 = vector.multi_reduction <add>, %5, %cst [1] : vector<2x16x24xf32> to vector<2x24xf32>
    %7 = vector.shape_cast %6 : vector<2x24xf32> to vector<2x1x24xf32>
    %8 = vector.broadcast %2 : vector<2x1x1xf32> to vector<2x1x24xf32>
    %9 = arith.mulf %7, %8 : vector<2x1x24xf32>
    %10 = vector.broadcast %9 : vector<2x1x24xf32> to vector<2x16x24xf32>
    %11 = arith.subf %0, %10 : vector<2x16x24xf32>
    %12 = vector.extract_strided_slice %11 {offsets = [0, 0, 0], sizes = [2, 16, 8], strides = [1, 1, 1]} : vector<2x16x24xf32> to vector<2x16x8xf32>
    %13 = vector.extract_strided_slice %11 {offsets = [0, 0, 8], sizes = [2, 16, 8], strides = [1, 1, 1]} : vector<2x16x24xf32> to vector<2x16x8xf32>
    %14 = vector.extract_strided_slice %11 {offsets = [0, 0, 16], sizes = [2, 16, 8], strides = [1, 1, 1]} : vector<2x16x24xf32> to vector<2x16x8xf32>
    %15 = arith.mulf %12, %12 : vector<2x16x8xf32>
    %16 = arith.mulf %13, %13 : vector<2x16x8xf32>
    %17 = arith.addf %15, %16 : vector<2x16x8xf32>
    %18 = arith.mulf %14, %14 : vector<2x16x8xf32>
    %19 = arith.addf %17, %18 : vector<2x16x8xf32>
    %20 = math.sqrt %19 : vector<2x16x8xf32>
    %cst_11 = arith.constant dense<0.000000e+00> : vector<2x8xf32>
    %21 = vector.multi_reduction <add>, %20, %cst_11 [1] : vector<2x16x8xf32> to vector<2x8xf32>
    %22 = vector.shape_cast %21 : vector<2x8xf32> to vector<2x1x8xf32>
    %23 = vector.broadcast %2 : vector<2x1x1xf32> to vector<2x1x8xf32>
    %24 = arith.mulf %22, %23 : vector<2x1x8xf32>
    %cst_12 = arith.constant 9.99999997E-7 : f32
    %25 = vector.broadcast %cst_12 : f32 to vector<2x1x8xf32>
    %26 = arith.addf %24, %25 : vector<2x1x8xf32>
    %27 = tpu.reciprocal %26 : vector<2x1x8xf32> -> vector<2x1x8xf32>
    %28 = tpu.concatenate %27, %27, %27 in 2 : vector<2x1x8xf32>, vector<2x1x8xf32>, vector<2x1x8xf32> -> vector<2x1x24xf32>
    %29 = vector.broadcast %3 : vector<1x1x24xf32> to vector<2x1x24xf32>
    %30 = arith.mulf %29, %28 : vector<2x1x24xf32>
    %31 = vector.broadcast %30 : vector<2x1x24xf32> to vector<2x16x24xf32>
    %32 = arith.mulf %11, %31 : vector<2x16x24xf32>
    %33 = vector.broadcast %1 : vector<2x16x1xf32> to vector<2x16x24xf32>
    %34 = arith.mulf %32, %33 : vector<2x16x24xf32>
    %c0_13 = arith.constant 0 : index
    %c0_14 = arith.constant 0 : index
    %c0_15 = arith.constant 0 : index
    %35 = vector.load %arg5[%c0_13, %c0_14, %c0_15] : memref<2x16x24xf32, #tpu.memory_space<vmem>>, vector<2x16x24xf32>
    tpu.vector_store %arg5[%c0_13, %c0_14, %c0_15], %34 {strides = array<i32>} : memref<2x16x24xf32, #tpu.memory_space<vmem>>, vector<2x16x24xf32>,
    return
  }
  func.func @transform_0(%arg0: i32) -> (i32, i32, i32) {
    %c0_i32 = arith.constant 0 : i32
    %c0_i32_0 = arith.constant 0 : i32
    %c0_i32_1 = arith.constant 0 : i32
    return %arg0, %c0_i32, %c0_i32_0 : i32, i32, i32
  }
  func.func @transform_1(%arg0: i32) -> (i32, i32, i32) {
    %c0_i32 = arith.constant 0 : i32
    %c0_i32_0 = arith.constant 0 : i32
    %c0_i32_1 = arith.constant 0 : i32
    return %arg0, %c0_i32, %c0_i32_0 : i32, i32, i32
  }
  func.func @transform_2(%arg0: i32) -> (i32, i32, i32) {
    %c0_i32 = arith.constant 0 : i32
    %c0_i32_0 = arith.constant 0 : i32
    %c0_i32_1 = arith.constant 0 : i32
    return %arg0, %c0_i32, %c0_i32_0 : i32, i32, i32
  }
  func.func @transform_3(%arg0: i32) -> (i32, i32, i32) {
    %c0_i32 = arith.constant 0 : i32
    %c0_i32_0 = arith.constant 0 : i32
    %c0_i32_1 = arith.constant 0 : i32
    %c0_i32_2 = arith.constant 0 : i32
    return %c0_i32, %c0_i32_0, %c0_i32_1 : i32, i32, i32
  }
  func.func @transform_4(%arg0: i32) -> (i32, i32, i32) {
    %c0_i32 = arith.constant 0 : i32
    %c0_i32_0 = arith.constant 0 : i32
    %c0_i32_1 = arith.constant 0 : i32
    return %arg0, %c0_i32, %c0_i32_0 : i32, i32, i32
  }
}

</mosaic_0001>

<llo_original>
// kernel: tpu_custom_call.1
$region0: #{tpu_custom_call.1}
  #allocation0 [shape = 'u32[]', space=smem, size = 0x4, offset = 0x4, fixed_abs, tag = 'smem constant byte address 0x4 - core index']
  #allocation1 [shape = 'u32[72,128]{1,0:T(1,128)}', space=vmem, size = 0x9000, scoped, tag = 'internal scratch']
  %s0 = inlined_call_operand.vmem [shape: f32[4,16,24], index: 0, kind: input, shape index: {}]
  %s1 = inlined_call_operand.vmem [shape: f32[4,16,1], index: 1, kind: input, shape index: {}]
  %s2 = inlined_call_operand.vmem [shape: f32[4,1,1], index: 2, kind: input, shape index: {}]
  %s3 = inlined_call_operand.vmem [shape: f32[1,1,24], index: 3, kind: input, shape index: {}]
  %s4 = inlined_call_operand.hbm [shape: f32[4,16,24], index: 4, kind: output, shape index: {}]
  %s5 = sld [smem:[#allocation0]]
  $region49: #{tpu_custom_call.1} parent=0
    _
  %s7 = ssub.s32 1, %s5
  %s8 = scalar_select 0, %s7, %s5
  $region1: #{tpu_custom_call.1} parent=0
    #allocation2 [shape = 'u8[32768]{0}', space=vmem, size = 0x8000, scoped, tag = 'output window, operand 0']
    #allocation3 [shape = 's32[2]{0}', space=sflag, size = 0x8, scoped, tag = 'scoped memory for tpu_custom_call.1']
    %9 = vsyncpa [#allocation3], 0
    %s10 = scalar_lea.sflag [#allocation3], 1
    %11 = vsyncpa %s10, 0
    loop: start=0, step=1, limit=4
    $region2: #{tpu_custom_call.1} parent=1 // loop_pre_header
      _
    $region3: #{tpu_custom_call.1} parent=1 // loop_header
      %s13 = sphi 0, %s17
      %p14 = scmp.ge.s32.totalorder %s13, 4
      %s23 = sphi 0, %s25
      %s26 = sphi 0, %s23
      %s27 = sphi 0, %s26
      %s43 = sphi 0, %s27
      %s49 = sphi 0, %s51
      %s52 = sphi 0, %s49
      %s53 = sphi 0, %s52
      %s69 = sphi 0, %s53
      %s75 = sphi 0, %s77
      %s78 = sphi 0, %s75
      %s79 = sphi 0, %s78
      %s95 = sphi 0, %s79
      %s99 = sphi 0, %s99
      %s101 = sphi 0, %s99
      %s102 = sphi 0, %s101
      %s116 = sphi 0, %s102
      %s122 = sphi 0, %s124
      %s125 = sphi 0, %s122
      %s126 = sphi 0, %s125
      %s142 = sphi 0, %s126
    $region4: #{tpu_custom_call.1} parent=1 // loop_header_branch
      %16 = sbr.rel (%p14) target = $region8
    $region5: #{tpu_custom_call.1} parent=1 // loop_body
      %s18 = ssub.s32 %s13, 1
      %s19 = ssub.s32 %s13, 2
      %s20 = sadd.s32 %s13, 1
      %s21 = ssub.s32 %s13, %s20
      %p22 = scmp.eq.s32.totalorder %s21, 0
      %s24 = sadd.s32 %s23, 1
      %s25 = scalar_select %p22, %s23, %s24
      %p28 = pneg %p22
      %p29 = scmp.eq.s32.totalorder %s13, 1
      %p30 = por %p28, %p29
      %p31 = scmp.ne.s32.totalorder %s23, %s26
      %p32 = scmp.eq.s32.totalorder %s13, 0
      %p33 = por %p31, %p32
      %p34 = scmp.ne.s32.totalorder %s23, %s26
      %p35 = scmp.eq.s32.totalorder %s18, 1
      %p36 = por %p34, %p35
      %p37 = scmp.ne.s32.totalorder %s26, %s27
      %p38 = scmp.eq.s32.totalorder %s18, 0
      %p39 = por %p37, %p38
      %p40 = scmp.ne.s32.totalorder %s26, %s27
      %p41 = scmp.eq.s32.totalorder %s19, 1
      %p42 = por %p40, %p41
      %p44 = scmp.ne.s32.totalorder %s27, %s43
      %p45 = scmp.eq.s32.totalorder %s19, 0
      %p46 = por %p44, %p45
      %s47 = ssub.s32 %s13, %s20
      %p48 = scmp.eq.s32.totalorder %s47, 0
      %s50 = sadd.s32 %s49, 1
      %s51 = scalar_select %p48, %s49, %s50
      %p54 = pneg %p48
      %p55 = scmp.eq.s32.totalorder %s13, 1
      %p56 = por %p54, %p55
      %p57 = scmp.ne.s32.totalorder %s49, %s52
      %p58 = scmp.eq.s32.totalorder %s13, 0
      %p59 = por %p57, %p58
      %p60 = scmp.ne.s32.totalorder %s49, %s52
      %p61 = scmp.eq.s32.totalorder %s18, 1
      %p62 = por %p60, %p61
      %p63 = scmp.ne.s32.totalorder %s52, %s53
      %p64 = scmp.eq.s32.totalorder %s18, 0
      %p65 = por %p63, %p64
      %p66 = scmp.ne.s32.totalorder %s52, %s53
      %p67 = scmp.eq.s32.totalorder %s19, 1
      %p68 = por %p66, %p67
      %p70 = scmp.ne.s32.totalorder %s53, %s69
      %p71 = scmp.eq.s32.totalorder %s19, 0
      %p72 = por %p70, %p71
      %s73 = ssub.s32 %s13, %s20
      %p74 = scmp.eq.s32.totalorder %s73, 0
      %s76 = sadd.s32 %s75, 1
      %s77 = scalar_select %p74, %s75, %s76
      %p80 = pneg %p74
      %p81 = scmp.eq.s32.totalorder %s13, 1
      %p82 = por %p80, %p81
      %p83 = scmp.ne.s32.totalorder %s75, %s78
      %p84 = scmp.eq.s32.totalorder %s13, 0
      %p85 = por %p83, %p84
      %p86 = scmp.ne.s32.totalorder %s75, %s78
      %p87 = scmp.eq.s32.totalorder %s18, 1
      %p88 = por %p86, %p87
      %p89 = scmp.ne.s32.totalorder %s78, %s79
      %p90 = scmp.eq.s32.totalorder %s18, 0
      %p91 = por %p89, %p90
      %p92 = scmp.ne.s32.totalorder %s78, %s79
      %p93 = scmp.eq.s32.totalorder %s19, 1
      %p94 = por %p92, %p93
      %p96 = scmp.ne.s32.totalorder %s79, %s95
      %p97 = scmp.eq.s32.totalorder %s19, 0
      %p98 = por %p96, %p97
      %s100 = sadd.s32 %s99, 1
      %p103 = scmp.eq.s32.totalorder %s13, 1
      %p104 = scmp.ne.s32.totalorder %s99, %s101
      %p105 = scmp.eq.s32.totalorder %s13, 0
      %p106 = por %p104, %p105
      %p107 = scmp.ne.s32.totalorder %s99, %s101
      %p108 = scmp.eq.s32.totalorder %s18, 1
      %p109 = por %p107, %p108
      %p110 = scmp.ne.s32.totalorder %s101, %s102
      %p111 = scmp.eq.s32.totalorder %s18, 0
      %p112 = por %p110, %p111
      %p113 = scmp.ne.s32.totalorder %s101, %s102
      %p114 = scmp.eq.s32.totalorder %s19, 1
      %p115 = por %p113, %p114
      %p117 = scmp.ne.s32.totalorder %s102, %s116
      %p118 = scmp.eq.s32.totalorder %s19, 0
      %p119 = por %p117, %p118
      %s120 = ssub.s32 %s13, %s20
      %p121 = scmp.eq.s32.totalorder %s120, 0
      %s123 = sadd.s32 %s122, 1
      %s124 = scalar_select %p121, %s122, %s123
      %p127 = pneg %p121
      %p128 = scmp.eq.s32.totalorder %s13, 1
      %p129 = por %p127, %p128
      %p130 = scmp.ne.s32.totalorder %s122, %s125
      %p131 = scmp.eq.s32.totalorder %s13, 0
      %p132 = por %p130, %p131
      %p133 = scmp.ne.s32.totalorder %s122, %s125
      %p134 = scmp.eq.s32.totalorder %s18, 1
      %p135 = por %p133, %p134
      %p136 = scmp.ne.s32.totalorder %s125, %s126
      %p137 = scmp.eq.s32.totalorder %s18, 0
      %p138 = por %p136, %p137
      %p139 = scmp.ne.s32.totalorder %s125, %s126
      %p140 = scmp.eq.s32.totalorder %s19, 1
      %p141 = por %p139, %p140
      %p143 = scmp.ne.s32.totalorder %s126, %s142
      %p144 = scmp.eq.s32.totalorder %s19, 0
      %p145 = por %p143, %p144
      %p146 = scmp.le.s32.totalorder 1, %s13
      %p147 = scmp.lt.s32.totalorder %s13, 3
      %p148 = pnand %p146, %p147
      %p149 = pneg %p148
      // Predicated region
      $region9: #{tpu_custom_call.1} parent=5 // pred_check
        _
      $region10: #{tpu_custom_call.1} parent=5 // pred_check_branch
        %151 = sbr.rel (%p148) target = $region12
      $region11: #{tpu_custom_call.1} parent=5 // pred_region
        %s152 = ssub.s32 %s13, 1
        // Predicated region
        $region13: #{tpu_custom_call.1} parent=11 // pred_check
          %p153 = pneg %p112
        $region14: #{tpu_custom_call.1} parent=11 // pred_check_branch
          %155 = sbr.rel (%p153) target = $region16
        $region15: #{tpu_custom_call.1} parent=11 // pred_region
          _
        $region16: #{tpu_custom_call.1} parent=11 // pred_fallthru
          _
      $region12: #{tpu_custom_call.1} parent=5 // pred_fallthru
        _
      %p156 = scmp.lt.s32.totalorder %s13, 2
      // Predicated region
      $region17: #{tpu_custom_call.1} parent=5 // pred_check
        %p157 = pneg %p156
      $region18: #{tpu_custom_call.1} parent=5 // pred_check_branch
        %159 = sbr.rel (%p157) target = $region20
      $region19: #{tpu_custom_call.1} parent=5 // pred_region
        // Predicated region
        $region21: #{tpu_custom_call.1} parent=19 // pred_check
          %p160 = pneg %p33
        $region22: #{tpu_custom_call.1} parent=19 // pred_check_branch
          %162 = sbr.rel (%p160) target = $region24
        $region23: #{tpu_custom_call.1} parent=19 // pred_region
          %s163 = smul.u32 2, %s13
          %p164 = scmp.lt.s32.totalorder %s163, 3
          %s165 = scalar_select %p164, %s163, 3
          %s166 = smul.addr %s165, 2
          %s167 = smul.addr %s166, 8
          %s168 = scalar_lea.vmem %s0, %s167
          %s169 = smul.u32 2, %s13
        $region24: #{tpu_custom_call.1} parent=19 // pred_fallthru
          _
        // Predicated region
        $region25: #{tpu_custom_call.1} parent=19 // pred_check
          %p170 = pneg %p59
        $region26: #{tpu_custom_call.1} parent=19 // pred_check_branch
          %172 = sbr.rel (%p170) target = $region28
        $region27: #{tpu_custom_call.1} parent=19 // pred_region
          %s173 = smul.u32 2, %s13
          %p174 = scmp.lt.s32.totalorder %s173, 3
          %s175 = scalar_select %p174, %s173, 3
          %s176 = smul.addr %s175, 2
          %s177 = smul.addr %s176, 8
          %s178 = scalar_lea.vmem %s1, %s177
          %s179 = smul.u32 2, %s13
        $region28: #{tpu_custom_call.1} parent=19 // pred_fallthru
          _
        // Predicated region
        $region29: #{tpu_custom_call.1} parent=19 // pred_check
          %p180 = pneg %p85
        $region30: #{tpu_custom_call.1} parent=19 // pred_check_branch
          %182 = sbr.rel (%p180) target = $region32
        $region31: #{tpu_custom_call.1} parent=19 // pred_region
          %s183 = smul.u32 2, %s13
          %p184 = scmp.lt.s32.totalorder %s183, 3
          %s185 = scalar_select %p184, %s183, 3
          %s186 = scalar_lea.vmem %s2, %s185
          %s187 = smul.u32 2, %s13
        $region32: #{tpu_custom_call.1} parent=19 // pred_fallthru
          _
      $region20: #{tpu_custom_call.1} parent=5 // pred_fallthru
        _
      %p188 = scmp.le.s32.totalorder 1, %s13
      %p189 = scmp.lt.s32.totalorder %s13, 3
      %p190 = pnand %p188, %p189
      %p191 = pneg %p190
      // Predicated region
      $region33: #{tpu_custom_call.1} parent=5 // pred_check
        _
      $region34: #{tpu_custom_call.1} parent=5 // pred_check_branch
        %193 = sbr.rel (%p190) target = $region36
      $region35: #{tpu_custom_call.1} parent=5 // pred_region
        %s194 = ssub.s32 %s13, 1
        %s195 = smul.u32 2, %s18
        %p196 = scmp.lt.s32.totalorder %s195, 3
        %s197 = scalar_select %p196, %s195, 3
        %s198 = smul.addr %s197, 2
        %s199 = smul.addr %s198, 8
        %s200 = scalar_lea.vmem %s0, %s199
        %p201 = pneg %p39
        %p202 = pneg %p36
        %s203 = smul.u32 2, %s18
        %p204 = scmp.lt.s32.totalorder %s203, 3
        %s205 = scalar_select %p204, %s203, 3
        %s206 = smul.addr %s205, 2
        %s207 = smul.addr %s206, 8
        %s208 = scalar_lea.vmem %s1, %s207
        %p209 = pneg %p65
        %p210 = pneg %p62
        %s211 = smul.u32 2, %s18
        %p212 = scmp.lt.s32.totalorder %s211, 3
        %s213 = scalar_select %p212, %s211, 3
        %s214 = scalar_lea.vmem %s2, %s213
        %p215 = pneg %p91
        %p216 = pneg %p88
        %p217 = pneg %p112
        %p218 = pneg %p109
        %p219 = pneg %p138
        %p220 = pneg %p135
        %s221 = sand.u32 %s125, 1
        %s222 = scalar_lea.sflag [#allocation3], %s221
        %s223 = sand.u32 %s125, 1
        %s224 = smul.addr %s223, 32
        %s225 = scalar_lea.vmem [#allocation2], %s224
        %s226 = smul.u32 2, %s18
        %p227 = scmp.lt.s32.totalorder %s226, 3
        %s228 = scalar_select %p227, %s226, 3
        %s229 = smul.addr %s228, 2
        %s230 = smul.addr %s229, 8
        %s231 = scalar_lea.vmem %s0, %s230
        %s232 = smul.u32 2, %s18
        %s233 = smul.u32 2, %s18
        %p234 = scmp.lt.s32.totalorder %s233, 3
        %s235 = scalar_select %p234, %s233, 3
        %s236 = smul.addr %s235, 2
        %s237 = smul.addr %s236, 8
        %s238 = scalar_lea.vmem %s1, %s237
        %s239 = smul.u32 2, %s18
        %s240 = smul.u32 2, %s18
        %p241 = scmp.lt.s32.totalorder %s240, 3
        %s242 = scalar_select %p241, %s240, 3
        %s243 = scalar_lea.vmem %s2, %s242
        %s244 = smul.u32 2, %s18
        %s245 = smul.u32 2, %s18
        %v246 = vld [vmem:[%s231] sm:$0xff]
        %v247 = vld [vmem:[%s231 + $0x8] sm:$0xff]
        %v248 = vld [vmem:[%s231 + $0x10] sm:$0xff]
        %v249 = vld [vmem:[%s231 + $0x18] sm:$0xff]
        %v250 = vld [vmem:[%s238] sm:$0xff]
        %v251 = vld [vmem:[%s238 + $0x8] sm:$0xff]
        %v252 = vld [vmem:[%s238 + $0x10] sm:$0xff]
        %v253 = vld [vmem:[%s238 + $0x18] sm:$0xff]
        %v254 = vld [vmem:[%s243] sm:$0x1]
        %v255 = vld [vmem:[%s243 + $0x1] sm:$0x1]
        %v256 = vld [vmem:[%s3] sm:$0x1]
        %258 = vset.pattern.permute.xlu0 0
        %259 = vperm.xlu0 %258, %v250
        %v260 = vpop.permute.xlu0 %259
        %263 = vset.pattern.permute.xlu0 0
        %264 = vperm.xlu0 %263, %v251
        %v265 = vpop.permute.xlu0 %264
        %268 = vset.pattern.permute.xlu0 0
        %269 = vperm.xlu0 %268, %v252
        %v270 = vpop.permute.xlu0 %269
        %273 = vset.pattern.permute.xlu0 0
        %274 = vperm.xlu0 %273, %v253
        %v275 = vpop.permute.xlu0 %274
        %v277 = vmul.f32 %v246, %v260
        %v278 = vmul.f32 %v247, %v265
        %v279 = vmul.f32 %v248, %v270
        %v280 = vmul.f32 %v249, %v275
        %vm281 = vcmask 195584
        %v282 = vsel %vm281, %v277, 0.0
        %v283 = vsel %vm281, %v278, 0.0
        %v284 = vadd.f32 %v282, %v283
        %v285 = vrot.slane %v284, 4
        %v286 = vadd.f32 %v284, %v285
        %v287 = vrot.slane %v286, 2
        %v288 = vadd.f32 %v286, %v287
        %v289 = vrot.slane %v288, 1
        %v290 = vadd.f32 %v288, %v289
        %v291 = vsel %vm281, %v279, 0.0
        %v292 = vsel %vm281, %v280, 0.0
        %v293 = vadd.f32 %v291, %v292
        %v294 = vrot.slane %v293, 4
        %v295 = vadd.f32 %v293, %v294
        %v296 = vrot.slane %v295, 2
        %v297 = vadd.f32 %v295, %v296
        %v298 = vrot.slane %v297, 1
        %v299 = vadd.f32 %v297, %v298
        %301 = vset.pattern.permute.xlu0 0
        %302 = vperm.xlu0 %301, %v254
        %v303 = vpop.permute.xlu0 %302
        %v305 = vperm.slane %v303, 0
        %307 = vset.pattern.permute.xlu0 0
        %308 = vperm.xlu0 %307, %v255
        %v309 = vpop.permute.xlu0 %308
        %v311 = vperm.slane %v309, 0
        %v312 = vmul.f32 %v290, %v305
        %v313 = vmul.f32 %v299, %v311
        %v314 = vsub.f32 %v246, %v312
        %v315 = vsub.f32 %v247, %v312
        %v316 = vsub.f32 %v248, %v313
        %v317 = vsub.f32 %v249, %v313
        %v318 = vmul.f32 %v314, %v314
        %v319 = vmul.f32 %v315, %v315
        %v320 = vmul.f32 %v316, %v316
        %v321 = vmul.f32 %v317, %v317
        %326 = vrot.lane.b32.xlu0 %v318, 120
        %v327 = vpop.permute.xlu0 %326
        %328 = vrot.lane.b32.xlu0 %v319, 120
        %v329 = vpop.permute.xlu0 %328
        %330 = vrot.lane.b32.xlu0 %v320, 120
        %v331 = vpop.permute.xlu0 %330
        %332 = vrot.lane.b32.xlu0 %v321, 120
        %v333 = vpop.permute.xlu0 %332
        %v338 = vadd.f32 %v318, %v327
        %v339 = vadd.f32 %v319, %v329
        %v340 = vadd.f32 %v320, %v331
        %v341 = vadd.f32 %v321, %v333
        %342 = vrot.lane.b32.xlu0 %v318, 112
        %v343 = vpop.permute.xlu0 %342
        %344 = vrot.lane.b32.xlu0 %v319, 112
        %v345 = vpop.permute.xlu0 %344
        %346 = vrot.lane.b32.xlu0 %v320, 112
        %v347 = vpop.permute.xlu0 %346
        %348 = vrot.lane.b32.xlu0 %v321, 112
        %v349 = vpop.permute.xlu0 %348
        %v354 = vadd.f32 %v338, %v343
        %v355 = vadd.f32 %v339, %v345
        %v356 = vadd.f32 %v340, %v347
        %v357 = vadd.f32 %v341, %v349
        %v358 = vrsqrt.pop %v354
        %v359 = vmul.f32 %v358, %v354
        %v360 = vmul.f32 %v359, %v358
        %v361 = vmul.f32 0.5, %v360
        %v362 = vsub.f32 1.5, %v361
        %v363 = vmul.f32 %v358, %v362
        %v364 = vmul.f32 %v354, %v363
        %vm365 = vcmp.eq.f32.partialorder %v354, inf
        %v366 = vsel %vm365, %v354, %v364
        %vm367 = vcmp.eq.f32.partialorder %v354, 0.0
        %v368 = vand.u32 %v354, 2147483648
        %v369 = vsel %vm367, %v368, %v366
        %v370 = vrsqrt.pop %v355
        %v371 = vmul.f32 %v370, %v355
        %v372 = vmul.f32 %v371, %v370
        %v373 = vmul.f32 0.5, %v372
        %v374 = vsub.f32 1.5, %v373
        %v375 = vmul.f32 %v370, %v374
        %v376 = vmul.f32 %v355, %v375
        %vm377 = vcmp.eq.f32.partialorder %v355, inf
        %v378 = vsel %vm377, %v355, %v376
        %vm379 = vcmp.eq.f32.partialorder %v355, 0.0
        %v380 = vand.u32 %v355, 2147483648
        %v381 = vsel %vm379, %v380, %v378
        %v382 = vrsqrt.pop %v356
        %v383 = vmul.f32 %v382, %v356
        %v384 = vmul.f32 %v383, %v382
        %v385 = vmul.f32 0.5, %v384
        %v386 = vsub.f32 1.5, %v385
        %v387 = vmul.f32 %v382, %v386
        %v388 = vmul.f32 %v356, %v387
        %vm389 = vcmp.eq.f32.partialorder %v356, inf
        %v390 = vsel %vm389, %v356, %v388
        %vm391 = vcmp.eq.f32.partialorder %v356, 0.0
        %v392 = vand.u32 %v356, 2147483648
        %v393 = vsel %vm391, %v392, %v390
        %v394 = vrsqrt.pop %v357
        %v395 = vmul.f32 %v394, %v357
        %v396 = vmul.f32 %v395, %v394
        %v397 = vmul.f32 0.5, %v396
        %v398 = vsub.f32 1.5, %v397
        %v399 = vmul.f32 %v394, %v398
        %v400 = vmul.f32 %v357, %v399
        %vm401 = vcmp.eq.f32.partialorder %v357, inf
        %v402 = vsel %vm401, %v357, %v400
        %vm403 = vcmp.eq.f32.partialorder %v357, 0.0
        %v404 = vand.u32 %v357, 2147483648
        %v405 = vsel %vm403, %v404, %v402
        %vm406 = vcmask 64512
        %v407 = vsel %vm406, %v369, 0.0
        %v408 = vsel %vm406, %v381, 0.0
        %v409 = vadd.f32 %v407, %v408
        %v410 = vrot.slane %v409, 4
        %v411 = vadd.f32 %v409, %v410
        %v412 = vrot.slane %v411, 2
        %v413 = vadd.f32 %v411, %v412
        %v414 = vrot.slane %v413, 1
        %v415 = vadd.f32 %v413, %v414
        %v416 = vsel %vm406, %v393, 0.0
        %v417 = vsel %vm406, %v405, 0.0
        %v418 = vadd.f32 %v416, %v417
        %v419 = vrot.slane %v418, 4
        %v420 = vadd.f32 %v418, %v419
        %v421 = vrot.slane %v420, 2
        %v422 = vadd.f32 %v420, %v421
        %v423 = vrot.slane %v422, 1
        %v424 = vadd.f32 %v422, %v423
        %v425 = vmul.f32 %v415, %v305
        %v426 = vmul.f32 %v424, %v311
        %v427 = vadd.f32 %v425, 1e-06
        %v428 = vadd.f32 %v426, 1e-06
        %v429 = vrcp.pop %v427
        %v430 = vmul.f32 %v427, %v429
        %v431 = vsub.f32 1.0, %v430
        %v432 = vmul.f32 %v429, %v431
        %v433 = vadd.f32 %v429, %v432
        %vm434 = vweird.f32 %v427
        %vm435 = vweird.f32 %v429
        %vm436 = vmor %vm434, %vm435
        %v437 = vsel %vm436, %v429, %v433
        %v438 = vand.u32 2147483647, %v427
        %vm439 = vcmp.eq.f32.partialorder %v438, 8.507059e+37
        %v440 = vand.u32 %v427, 2147483648
        %v441 = vor.u32 1.1754944e-38, %v440
        %v442 = vsel %vm439, %v441, %v437
        %v443 = vrcp.pop %v428
        %v444 = vmul.f32 %v428, %v443
        %v445 = vsub.f32 1.0, %v444
        %v446 = vmul.f32 %v443, %v445
        %v447 = vadd.f32 %v443, %v446
        %vm448 = vweird.f32 %v428
        %vm449 = vweird.f32 %v443
        %vm450 = vmor %vm448, %vm449
        %v451 = vsel %vm450, %v443, %v447
        %v452 = vand.u32 2147483647, %v428
        %vm453 = vcmp.eq.f32.partialorder %v452, 8.507059e+37
        %v454 = vand.u32 %v428, 2147483648
        %v455 = vor.u32 1.1754944e-38, %v454
        %v456 = vsel %vm453, %v455, %v451
        %459 = vrot.lane.b32.xlu0 %v442, 8
        %v460 = vpop.permute.xlu0 %459
        %461 = vrot.lane.b32.xlu0 %v456, 8
        %v462 = vpop.permute.xlu0 %461
        %465 = vrot.lane.b32.xlu0 %v442, 16
        %v466 = vpop.permute.xlu0 %465
        %467 = vrot.lane.b32.xlu0 %v456, 16
        %v468 = vpop.permute.xlu0 %467
        %v471 = vsel %vm406, %v442, %v460
        %v472 = vsel %vm406, %v456, %v462
        %vm473 = vcmask 130048
        %v474 = vsel %vm473, %v471, %v466
        %v475 = vsel %vm473, %v472, %v468
        %v476 = vmul.f32 %v256, %v474
        %v477 = vmul.f32 %v256, %v475
        %v480 = vperm.slane %v476, 0
        %v481 = vperm.slane %v477, 0
        %v484 = vmul.f32 %v314, %v480
        %v485 = vmul.f32 %v315, %v480
        %v486 = vmul.f32 %v316, %v481
        %v487 = vmul.f32 %v317, %v481
        %v488 = vmul.f32 %v484, %v260
        %v489 = vmul.f32 %v485, %v265
        %v490 = vmul.f32 %v486, %v270
        %v491 = vmul.f32 %v487, %v275
        %492 = vst.msk [vmem:[%s225] sm:$0xff] %vm281, %v488
        %493 = vst.msk [vmem:[%s225 + $0x8] sm:$0xff] %vm281, %v489
        %494 = vst.msk [vmem:[%s225 + $0x10] sm:$0xff] %vm281, %v490
        %495 = vst.msk [vmem:[%s225 + $0x18] sm:$0xff] %vm281, %v491
        %s496 = sand.u32 %s125, 1
        %s497 = scalar_lea.sflag [#allocation3], %s496
        %s498 = sand.u32 %s125, 1
        %s499 = smul.addr %s498, 32
        %s500 = scalar_lea.vmem [#allocation2], %s499
        // Predicated region
        $region37: #{tpu_custom_call.1} parent=35 // pred_check
          %p501 = pneg %p135
        $region38: #{tpu_custom_call.1} parent=35 // pred_check_branch
          %503 = sbr.rel (%p501) target = $region40
        $region39: #{tpu_custom_call.1} parent=35 // pred_region
          %s504 = smul.u32 2, %s18
          %506 = vsyncadd %s497, 0
          %s507 = smul.addr %s504, 2
          %s508 = smul.addr %s507, 8
          %s509 = scalar_lea.hbm %s4, %s508
          %s510 = sshll.u32 %s500, 4
          %s511 = int_to_ptr.vmem [resolvable:$true] %s510
          %s512 = sshll.u32 %s509, 4
          %s513 = int_to_ptr.hbm [resolvable:$true] %s512
          %518 = dma.vmem_to_hbm [thread:$0]  %s511, 512, %s513, %s497, 128, 128, 8
        $region40: #{tpu_custom_call.1} parent=35 // pred_fallthru
          _
      $region36: #{tpu_custom_call.1} parent=5 // pred_fallthru
        _
      %p519 = scmp.le.s32.totalorder 2, %s13
      // Predicated region
      $region41: #{tpu_custom_call.1} parent=5 // pred_check
        %p520 = pneg %p519
      $region42: #{tpu_custom_call.1} parent=5 // pred_check_branch
        %522 = sbr.rel (%p520) target = $region44
      $region43: #{tpu_custom_call.1} parent=5 // pred_region
        %s523 = ssub.s32 %s13, 2
        // Predicated region
        $region45: #{tpu_custom_call.1} parent=43 // pred_check
          %p524 = pneg %p141
        $region46: #{tpu_custom_call.1} parent=43 // pred_check_branch
          %526 = sbr.rel (%p524) target = $region48
        $region47: #{tpu_custom_call.1} parent=43 // pred_region
          %s527 = sand.u32 %s126, 1
          %s528 = scalar_lea.sflag [#allocation3], %s527
          %s529 = sand.u32 %s126, 1
          %s530 = smul.addr %s529, 32
          %s531 = scalar_lea.vmem [#allocation2], %s530
          %533 = dma.done %s528, 512
        $region48: #{tpu_custom_call.1} parent=43 // pred_fallthru
          _
      $region44: #{tpu_custom_call.1} parent=5 // pred_fallthru
        _
    $region6: #{tpu_custom_call.1} parent=1 // loop_footer
      %s17 = sadd.s32 1, %s13
    $region7: #{tpu_custom_call.1} parent=1 // loop_footer_branch
      %12 = sbr.rel target = $region3
    $region8: #{tpu_custom_call.1} parent=1 // loop_exit
      _
    %534 = vsyncpa [#allocation3], 1
    %s535 = scalar_lea.sflag [#allocation3], 1
    %536 = vsyncpa %s535, 1

</llo_original>
